<compile_context>
chip_gen: v5e
topology: v5e:2x2
jax: 0.10.0
libtpu: 0.0.40
codegen_flags: <defaults>
</compile_context>

<pallas_src>
import functools
import math

import jax
import jax.numpy as jnp
from jax import lax
from jax.experimental import pallas as pl
from jax.experimental.pallas import tpu as pltpu

LANE = 128


def _round_up(x, m):
    return (x + m - 1) // m * m


def _mha_kernel(x_ref, wqkv_ref, wp_ref, bp_ref, out_ref, *,
                seq_len, num_heads, head_size):
    """One grid step = one batch element (full sequence).

    x_ref   : (1, T, Cp)     lane-dense (padded) hidden state
    wqkv_ref: (Cp, 3*H*hs)   fused QKV weight; 1/sqrt(hs) folded into Q block
    wp_ref  : (H*hs, Cp)     output-projection weight (padded cols)
    bp_ref  : (1, Cp)        output-projection bias (padded)
    out_ref : (1, T, Cp)
    """
    T = seq_len
    H = num_heads
    hs = head_size
    hhs = H * hs

    x = x_ref[0]                                                  # (T, Cp)

    # One wide QKV projection: a single MXU push with contraction depth Cp.
    qkv = jnp.dot(x, wqkv_ref[...],
                  preferred_element_type=jnp.float32)             # (T, 3*H*hs)

    # Slice Q/K/V exactly once each (not 3*H per-head slices); the head dim
    # becomes a batch dim of the einsums below.
    q = qkv[:, 0 * hhs:1 * hhs].reshape(T, H, hs)
    k = qkv[:, 1 * hhs:2 * hhs].reshape(T, H, hs)
    v = qkv[:, 2 * hhs:3 * hhs].reshape(T, H, hs)

    # Causal mask, built once per grid step (outside any head/kv loop).
    row = lax.broadcasted_iota(jnp.int32, (T, T), 0)
    col = lax.broadcasted_iota(jnp.int32, (T, T), 1)
    causal = (row >= col)[None]                                   # (1, T, T)
    neg = jnp.float32(-1e30)   # finite -> NaN-safe even for padded rows

    # Scores for ALL heads at once (scale already folded into Wq).
    s = jnp.einsum('thd,shd->hts', q, k,
                   preferred_element_type=jnp.float32)            # (H, T, T)
    s = jnp.where(causal, s, neg)

    # Row-wise softmax in f32 with an exact reciprocal (EUP slot, ~free).
    m = jnp.max(s, axis=-1, keepdims=True)
    e = jnp.exp(s - m)
    denom = jnp.sum(e, axis=-1, keepdims=True)
    p = e * pl.reciprocal(denom, approx=False)

    # Weighted values for all heads at once -> (T, H, hs).
    att = jnp.einsum('hts,shd->thd', p, v,
                     preferred_element_type=jnp.float32)

    # Single fused output projection: (T, H*hs) @ (H*hs, Cp) + b.
    out = jnp.dot(att.reshape(T, hhs), wp_ref[...],
                  preferred_element_type=jnp.float32) + bp_ref[...]
    out_ref[0] = out.astype(out_ref.dtype)


def prepare_params(wq, wk, wv, wp, bp, *, head_size, c_pad):
    """One-time (init-time) parameter transform.

    wq/wk/wv: (H, C, hs) stacked per-head weights (x @ w convention)
    wp      : (H*hs, C)
    bp      : (C,)
    Returns (all lane-dense along the C axis, padded to c_pad):
      wqkv: (c_pad, 3*H*hs)  fused projection, 1/sqrt(hs) folded into Q block
      wp_p: (H*hs, c_pad)
      bp_p: (1, c_pad)
    """
    H, C, hs = wq.shape
    scale = head_size ** -0.5

    def to_wide(w):                       # (H, C, hs) -> (C, H*hs), head-major
        return jnp.transpose(w, (1, 0, 2)).reshape(C, H * hs)

    wqkv = jnp.concatenate(
        [to_wide(wq) * scale, to_wide(wk), to_wide(wv)], axis=1)
    wqkv = jnp.pad(wqkv, ((0, c_pad - C), (0, 0)))    # zero rows: no effect
    wp_p = jnp.pad(wp, ((0, 0), (0, c_pad - C)))      # zero cols: sliced off
    bp_p = jnp.pad(bp, (0, c_pad - C)).reshape(1, c_pad)
    return wqkv, wp_p, bp_p


def multi_head_attention(x, wqkv, wp_p, bp_p, *, num_heads, head_size):
    """x: (B, T, C) float32.  Returns (B, T, C)."""
    B, T, C = x.shape
    hhs = num_heads * head_size
    Cp = wqkv.shape[0]
    assert wqkv.shape == (Cp, 3 * hhs)
    assert wp_p.shape == (hhs, Cp)
    assert bp_p.shape == (1, Cp)

    # Lane-dense channels: pad C up to a multiple of 128 (no-op if already).
    xp = x if Cp == C else jnp.pad(x, ((0, 0), (0, 0), (0, Cp - C)))

    kernel = functools.partial(_mha_kernel, seq_len=T,
                               num_heads=num_heads, head_size=head_size)

    out = pl.pallas_call(
        kernel,
        out_shape=jax.ShapeDtypeStruct((B, T, Cp), x.dtype),
        grid=(B,),                                   # pipelined + megacore
        in_specs=[
            pl.BlockSpec((1, T, Cp), lambda b: (b, 0, 0)),          # x
            pl.BlockSpec((Cp, 3 * hhs), lambda b: (0, 0)),          # Wqkv
            pl.BlockSpec((hhs, Cp), lambda b: (0, 0)),              # Wproj
            pl.BlockSpec((1, Cp), lambda b: (0, 0)),                # bproj
        ],
        out_specs=pl.BlockSpec((1, T, Cp), lambda b: (b, 0, 0)),
        compiler_params=pltpu.CompilerParams(
            dimension_semantics=("parallel",),       # shards across TCs (v7x)
            vmem_limit_bytes=32 * 1024 * 1024,       # explicit (v5e default=16M)
        ),
    )(xp, wqkv, wp_p, bp_p)
    return out[:, :, :C]


def reference(x, wq, wk, wv, wp, bp, *, num_heads, head_size):
    """Pure-JAX reference mirroring the PyTorch forward (eval mode)."""
    B, T, C = x.shape
    outs = []
    for h in range(num_heads):
        q = x @ wq[h]
        k = x @ wk[h]
        v = x @ wv[h]
        wei = (q @ jnp.swapaxes(k, -2, -1)) * head_size ** -0.5
        mask = jnp.tril(jnp.ones((T, T), dtype=bool))
        wei = jnp.where(mask, wei, -jnp.inf)
        wei = jax.nn.softmax(wei, axis=-1)
        outs.append(wei @ v)
    cat = jnp.concatenate(outs, axis=-1)
    return cat @ wp + bp


if __name__ == "__main__":
    # Small config consistent with the module's forward:
    #   B=2, block_size T=8, num_input_features C=32, num_heads=4, head_size=8
    B, T, C = 2, 8, 32
    num_heads, head_size = 4, 8
    dropout = 0.1  # inactive (eval-mode identity)

    key = jax.random.PRNGKey(0)
    kx, kq, kk, kv, kp, kb = jax.random.split(key, 6)

    x = jax.random.normal(kx, (B, T, C), dtype=jnp.float32)

    # Deterministic parameter init (shapes per nn.Linear in the module),
    # stored as (in, out) so the math is x @ W.
    s_in = 1.0 / math.sqrt(C)
    s_cat = 1.0 / math.sqrt(num_heads * head_size)
    wq = jax.random.uniform(kq, (num_heads, C, head_size), jnp.float32, -s_in, s_in)
    wk = jax.random.uniform(kk, (num_heads, C, head_size), jnp.float32, -s_in, s_in)
    wv = jax.random.uniform(kv, (num_heads, C, head_size), jnp.float32, -s_in, s_in)
    wp = jax.random.uniform(kp, (num_heads * head_size, C), jnp.float32, -s_cat, s_cat)
    bp = jax.random.uniform(kb, (C,), jnp.float32, -s_cat, s_cat)

    # One-time parameter fusion + lane-dense padding (init-time, not per-call).
    Cp = _round_up(C, LANE)
    wqkv, wp_p, bp_p = prepare_params(wq, wk, wv, wp, bp,
                                      head_size=head_size, c_pad=Cp)

    out = multi_head_attention(x, wqkv, wp_p, bp_p,
                               num_heads=num_heads, head_size=head_size)
    out = jax.block_until_ready(out)

    ref = reference(x, wq, wk, wv, wp, bp,
                    num_heads=num_heads, head_size=head_size)
    assert out.shape == (B, T, C)
    # Softmax reciprocal is exact now; remaining tolerance covers MXU matmul
    # precision differences vs the XLA reference.
    assert jnp.allclose(out, ref, atol=1e-2, rtol=1e-2), "mismatch vs reference"

    print("KERNEL_OK")
</pallas_src>

<mosaic_0001>
module attributes {stable_mosaic.version = 11 : i64} {
  func.func @_mha_kernel(%arg0: i32, %arg1: memref<1x8x128xf32, #tpu.memory_space<vmem>>, %arg2: memref<128x96xf32, #tpu.memory_space<vmem>>, %arg3: memref<32x128xf32, #tpu.memory_space<vmem>>, %arg4: memref<1x128xf32, #tpu.memory_space<vmem>>, %arg5: memref<1x8x128xf32, #tpu.memory_space<vmem>>) attributes {dimension_semantics = [#tpu.dimension_semantics<parallel>], iteration_bounds = array<i64: 2>, scalar_prefetch = 0 : i64, scratch_operands = 0 : i64, tpu.core_type = #tpu.core_type<tc>, window_params = [{transform_indices = @transform_0, window_bounds = array<i64: 1, 8, 128>}, {pipeline_mode = #tpu.pipeline_mode<synchronous>, transform_indices = @transform_1, window_bounds = array<i64: 128, 96>}, {pipeline_mode = #tpu.pipeline_mode<synchronous>, transform_indices = @transform_2, window_bounds = array<i64: 32, 128>}, {pipeline_mode = #tpu.pipeline_mode<synchronous>, transform_indices = @transform_3, window_bounds = array<i64: 1, 128>}, {transform_indices = @transform_4, window_bounds = array<i64: 1, 8, 128>}]} {
    %c0 = arith.constant 0 : index
    %c0_0 = arith.constant 0 : index
    %c0_1 = arith.constant 0 : index
    %0 = vector.load %arg1[%c0, %c0_0, %c0_1] : memref<1x8x128xf32, #tpu.memory_space<vmem>>, vector<1x8x128xf32>
    %1 = vector.shape_cast %0 : vector<1x8x128xf32> to vector<8x128xf32>
    %c0_2 = arith.constant 0 : index
    %c0_3 = arith.constant 0 : index
    %2 = vector.load %arg2[%c0_2, %c0_3] : memref<128x96xf32, #tpu.memory_space<vmem>>, vector<128x96xf32>
    %cst = arith.constant dense<0.000000e+00> : vector<8x96xf32>
    %3 = tpu.matmul %1, %2, %cst {dimension_numbers = #tpu.dot_dimension_numbers<[1], [0], [0], [1], [0, 0, 1, 1], [], []>} : vector<8x128xf32>, vector<128x96xf32>, vector<8x96xf32> -> vector<8x96xf32>
    %4 = vector.extract_strided_slice %3 {offsets = [0, 0], sizes = [8, 32], strides = [1, 1]} : vector<8x96xf32> to vector<8x32xf32>
    %5 = vector.shape_cast %4 : vector<8x32xf32> to vector<8x4x8xf32>
    %6 = vector.extract_strided_slice %3 {offsets = [0, 32], sizes = [8, 32], strides = [1, 1]} : vector<8x96xf32> to vector<8x32xf32>
    %7 = vector.shape_cast %6 : vector<8x32xf32> to vector<8x4x8xf32>
    %8 = vector.extract_strided_slice %3 {offsets = [0, 64], sizes = [8, 32], strides = [1, 1]} : vector<8x96xf32> to vector<8x32xf32>
    %9 = vector.shape_cast %8 : vector<8x32xf32> to vector<8x4x8xf32>
    %10 = tpu.iota {dimensions = array<i32: 0>} : vector<8x8xi32>
    %11 = tpu.iota {dimensions = array<i32: 1>} : vector<8x8xi32>
    %12 = arith.cmpi sge, %10, %11 : vector<8x8xi32>
    %13 = vector.shape_cast %12 : vector<8x8xi1> to vector<1x8x8xi1>
    "tpu.trace_start"() <{level = 10 : i32, message = "thd,shd->hts"}> : () -> ()
    %cst_4 = arith.constant dense<0.000000e+00> : vector<4x8x8xf32>
    %14 = tpu.matmul %5, %7, %cst_4 {dimension_numbers = #tpu.dot_dimension_numbers<[2], [2], [0], [0], [0, 1, 0, 0, 1, 0], [1], [1]>} : vector<8x4x8xf32>, vector<8x4x8xf32>, vector<4x8x8xf32> -> vector<4x8x8xf32>
    %cst_5 = arith.constant -1.000000e+30 : f32
    "tpu.trace_stop"() : () -> ()
    %15 = vector.shape_cast %13 : vector<1x8x8xi1> to vector<1x8x8xi1>
    %16 = vector.broadcast %15 : vector<1x8x8xi1> to vector<4x8x8xi1>
    %17 = vector.broadcast %cst_5 : f32 to vector<4x8x8xf32>
    %18 = arith.select %16, %14, %17 : vector<4x8x8xi1>, vector<4x8x8xf32>
    %cst_6 = arith.constant dense<0xFF800000> : vector<4x8xf32>
    %19 = vector.multi_reduction <maximumf>, %18, %cst_6 [2] : vector<4x8x8xf32> to vector<4x8xf32>
    %20 = vector.shape_cast %19 : vector<4x8xf32> to vector<4x8x1xf32>
    %21 = vector.broadcast %20 : vector<4x8x1xf32> to vector<4x8x8xf32>
    %22 = arith.subf %18, %21 : vector<4x8x8xf32>
    %23 = math.exp %22 : vector<4x8x8xf32>
    %cst_7 = arith.constant dense<0.000000e+00> : vector<4x8xf32>
    %24 = vector.multi_reduction <add>, %23, %cst_7 [2] : vector<4x8x8xf32> to vector<4x8xf32>
    %25 = vector.shape_cast %24 : vector<4x8xf32> to vector<4x8x1xf32>
    %26 = tpu.reciprocal %25 : vector<4x8x1xf32> -> vector<4x8x1xf32>
    %27 = vector.broadcast %26 : vector<4x8x1xf32> to vector<4x8x8xf32>
    %28 = arith.mulf %23, %27 : vector<4x8x8xf32>
    "tpu.trace_start"() <{level = 10 : i32, message = "hts,shd->thd"}> : () -> ()
    %cst_8 = arith.constant dense<0.000000e+00> : vector<4x8x8xf32>
    %29 = tpu.matmul %9, %28, %cst_8 {dimension_numbers = #tpu.dot_dimension_numbers<[0], [2], [2], [1], [0, 1, 0, 2, 1, 1], [1], [0]>} : vector<8x4x8xf32>, vector<4x8x8xf32>, vector<4x8x8xf32> -> vector<4x8x8xf32>
    %30 = tpu.transpose %29, [2, 0, 1] : vector<4x8x8xf32> -> vector<8x4x8xf32>
    "tpu.trace_stop"() : () -> ()
    %31 = vector.shape_cast %30 : vector<8x4x8xf32> to vector<8x32xf32>
    %c0_9 = arith.constant 0 : index
    %c0_10 = arith.constant 0 : index
    %32 = vector.load %arg3[%c0_9, %c0_10] : memref<32x128xf32, #tpu.memory_space<vmem>>, vector<32x128xf32>
    %cst_11 = arith.constant dense<0.000000e+00> : vector<8x128xf32>
    %33 = tpu.matmul %31, %32, %cst_11 {dimension_numbers = #tpu.dot_dimension_numbers<[1], [0], [0], [1], [0, 0, 1, 1], [], []>} : vector<8x32xf32>, vector<32x128xf32>, vector<8x128xf32> -> vector<8x128xf32>
    %c0_12 = arith.constant 0 : index
    %c0_13 = arith.constant 0 : index
    %34 = vector.load %arg4[%c0_12, %c0_13] : memref<1x128xf32, #tpu.memory_space<vmem>>, vector<1x128xf32>
    %35 = vector.broadcast %34 : vector<1x128xf32> to vector<8x128xf32>
    %36 = arith.addf %33, %35 : vector<8x128xf32>
    %c0_14 = arith.constant 0 : index
    %c0_15 = arith.constant 0 : index
    %c0_16 = arith.constant 0 : index
    %37 = vector.load %arg5[%c0_14, %c0_15, %c0_16] : memref<1x8x128xf32, #tpu.memory_space<vmem>>, vector<1x8x128xf32>
    %38 = vector.shape_cast %37 : vector<1x8x128xf32> to vector<8x128xf32>
    %39 = vector.shape_cast %36 : vector<8x128xf32> to vector<1x8x128xf32>
    tpu.vector_store %arg5[%c0_14, %c0_15, %c0_16], %39 {strides = array<i32>} : memref<1x8x128xf32, #tpu.memory_space<vmem>>, vector<1x8x128xf32>,
    return
  }
  func.func @transform_0(%arg0: i32) -> (i32, i32, i32) {
    %c0_i32 = arith.constant 0 : i32
    %c0_i32_0 = arith.constant 0 : i32
    %c0_i32_1 = arith.constant 0 : i32
    return %arg0, %c0_i32, %c0_i32_0 : i32, i32, i32
  }
  func.func @transform_1(%arg0: i32) -> (i32, i32) {
    %c0_i32 = arith.constant 0 : i32
    %c0_i32_0 = arith.constant 0 : i32
    %c0_i32_1 = arith.constant 0 : i32
    return %c0_i32, %c0_i32_0 : i32, i32
  }
  func.func @transform_2(%arg0: i32) -> (i32, i32) {
    %c0_i32 = arith.constant 0 : i32
    %c0_i32_0 = arith.constant 0 : i32
    %c0_i32_1 = arith.constant 0 : i32
    return %c0_i32, %c0_i32_0 : i32, i32
  }
  func.func @transform_3(%arg0: i32) -> (i32, i32) {
    %c0_i32 = arith.constant 0 : i32
    %c0_i32_0 = arith.constant 0 : i32
    %c0_i32_1 = arith.constant 0 : i32
    return %c0_i32, %c0_i32_0 : i32, i32
  }
  func.func @transform_4(%arg0: i32) -> (i32, i32, i32) {
    %c0_i32 = arith.constant 0 : i32
    %c0_i32_0 = arith.constant 0 : i32
    %c0_i32_1 = arith.constant 0 : i32
    return %arg0, %c0_i32, %c0_i32_0 : i32, i32, i32
  }
}

</mosaic_0001>

<llo_original>
// kernel: tpu_custom_call.1
$region0: #{tpu_custom_call.1}
  #allocation0 [shape = 'u32[]', space=smem, size = 0x4, offset = 0x4, fixed_abs, tag = 'smem constant byte address 0x4 - core index']
  #allocation1 [shape = 'u32[72,128]{1,0:T(1,128)}', space=vmem, size = 0x9000, scoped, tag = 'internal scratch']
  %s0 = inlined_call_operand.vmem [shape: f32[2,8,128], index: 0, kind: input, shape index: {}]
  %s1 = inlined_call_operand.vmem [shape: f32[128,96], index: 1, kind: input, shape index: {}]
  %s2 = inlined_call_operand.vmem [shape: f32[32,128], index: 2, kind: input, shape index: {}]
  %s3 = inlined_call_operand.vmem [shape: f32[1,128], index: 3, kind: input, shape index: {}]
  %s4 = inlined_call_operand.hbm [shape: f32[2,8,128], index: 4, kind: output, shape index: {}]
  %s5 = sld [smem:[#allocation0]]
  $region49: #{tpu_custom_call.1} parent=0
    _
  %s7 = ssub.s32 1, %s5
  %s8 = scalar_select 0, %s7, %s5
  $region1: #{tpu_custom_call.1} parent=0
    #allocation2 [shape = 'u8[8192]{0}', space=vmem, size = 0x2000, scoped, tag = 'output window, operand 0']
    #allocation3 [shape = 's32[2]{0}', space=sflag, size = 0x8, scoped, tag = 'scoped memory for tpu_custom_call.1']
    %9 = vsyncpa [#allocation3], 0
    %s10 = scalar_lea.sflag [#allocation3], 1
    %11 = vsyncpa %s10, 0
    loop: start=0, step=1, limit=4
    $region2: #{tpu_custom_call.1} parent=1 // loop_pre_header
      _
    $region3: #{tpu_custom_call.1} parent=1 // loop_header
      %s13 = sphi 0, %s17
      %p14 = scmp.ge.s32.totalorder %s13, 4
      %s23 = sphi 0, %s25
      %s26 = sphi 0, %s23
      %s27 = sphi 0, %s26
      %s43 = sphi 0, %s27
      %s47 = sphi 0, %s47
      %s49 = sphi 0, %s47
      %s50 = sphi 0, %s49
      %s64 = sphi 0, %s50
      %s68 = sphi 0, %s68
      %s70 = sphi 0, %s68
      %s71 = sphi 0, %s70
      %s85 = sphi 0, %s71
      %s89 = sphi 0, %s89
      %s91 = sphi 0, %s89
      %s92 = sphi 0, %s91
      %s106 = sphi 0, %s92
      %s112 = sphi 0, %s114
      %s115 = sphi 0, %s112
      %s116 = sphi 0, %s115
      %s132 = sphi 0, %s116
    $region4: #{tpu_custom_call.1} parent=1 // loop_header_branch
      %16 = sbr.rel (%p14) target = $region8
    $region5: #{tpu_custom_call.1} parent=1 // loop_body
      %s18 = ssub.s32 %s13, 1
      %s19 = ssub.s32 %s13, 2
      %s20 = sadd.s32 %s13, 1
      %s21 = ssub.s32 %s13, %s20
      %p22 = scmp.eq.s32.totalorder %s21, 0
      %s24 = sadd.s32 %s23, 1
      %s25 = scalar_select %p22, %s23, %s24
      %p28 = pneg %p22
      %p29 = scmp.eq.s32.totalorder %s13, 1
      %p30 = por %p28, %p29
      %p31 = scmp.ne.s32.totalorder %s23, %s26
      %p32 = scmp.eq.s32.totalorder %s13, 0
      %p33 = por %p31, %p32
      %p34 = scmp.ne.s32.totalorder %s23, %s26
      %p35 = scmp.eq.s32.totalorder %s18, 1
      %p36 = por %p34, %p35
      %p37 = scmp.ne.s32.totalorder %s26, %s27
      %p38 = scmp.eq.s32.totalorder %s18, 0
      %p39 = por %p37, %p38
      %p40 = scmp.ne.s32.totalorder %s26, %s27
      %p41 = scmp.eq.s32.totalorder %s19, 1
      %p42 = por %p40, %p41
      %p44 = scmp.ne.s32.totalorder %s27, %s43
      %p45 = scmp.eq.s32.totalorder %s19, 0
      %p46 = por %p44, %p45
      %s48 = sadd.s32 %s47, 1
      %p51 = scmp.eq.s32.totalorder %s13, 1
      %p52 = scmp.ne.s32.totalorder %s47, %s49
      %p53 = scmp.eq.s32.totalorder %s13, 0
      %p54 = por %p52, %p53
      %p55 = scmp.ne.s32.totalorder %s47, %s49
      %p56 = scmp.eq.s32.totalorder %s18, 1
      %p57 = por %p55, %p56
      %p58 = scmp.ne.s32.totalorder %s49, %s50
      %p59 = scmp.eq.s32.totalorder %s18, 0
      %p60 = por %p58, %p59
      %p61 = scmp.ne.s32.totalorder %s49, %s50
      %p62 = scmp.eq.s32.totalorder %s19, 1
      %p63 = por %p61, %p62
      %p65 = scmp.ne.s32.totalorder %s50, %s64
      %p66 = scmp.eq.s32.totalorder %s19, 0
      %p67 = por %p65, %p66
      %s69 = sadd.s32 %s68, 1
      %p72 = scmp.eq.s32.totalorder %s13, 1
      %p73 = scmp.ne.s32.totalorder %s68, %s70
      %p74 = scmp.eq.s32.totalorder %s13, 0
      %p75 = por %p73, %p74
      %p76 = scmp.ne.s32.totalorder %s68, %s70
      %p77 = scmp.eq.s32.totalorder %s18, 1
      %p78 = por %p76, %p77
      %p79 = scmp.ne.s32.totalorder %s70, %s71
      %p80 = scmp.eq.s32.totalorder %s18, 0
      %p81 = por %p79, %p80
      %p82 = scmp.ne.s32.totalorder %s70, %s71
      %p83 = scmp.eq.s32.totalorder %s19, 1
      %p84 = por %p82, %p83
      %p86 = scmp.ne.s32.totalorder %s71, %s85
      %p87 = scmp.eq.s32.totalorder %s19, 0
      %p88 = por %p86, %p87
      %s90 = sadd.s32 %s89, 1
      %p93 = scmp.eq.s32.totalorder %s13, 1
      %p94 = scmp.ne.s32.totalorder %s89, %s91
      %p95 = scmp.eq.s32.totalorder %s13, 0
      %p96 = por %p94, %p95
      %p97 = scmp.ne.s32.totalorder %s89, %s91
      %p98 = scmp.eq.s32.totalorder %s18, 1
      %p99 = por %p97, %p98
      %p100 = scmp.ne.s32.totalorder %s91, %s92
      %p101 = scmp.eq.s32.totalorder %s18, 0
      %p102 = por %p100, %p101
      %p103 = scmp.ne.s32.totalorder %s91, %s92
      %p104 = scmp.eq.s32.totalorder %s19, 1
      %p105 = por %p103, %p104
      %p107 = scmp.ne.s32.totalorder %s92, %s106
      %p108 = scmp.eq.s32.totalorder %s19, 0
      %p109 = por %p107, %p108
      %s110 = ssub.s32 %s13, %s20
      %p111 = scmp.eq.s32.totalorder %s110, 0
      %s113 = sadd.s32 %s112, 1
      %s114 = scalar_select %p111, %s112, %s113
      %p117 = pneg %p111
      %p118 = scmp.eq.s32.totalorder %s13, 1
      %p119 = por %p117, %p118
      %p120 = scmp.ne.s32.totalorder %s112, %s115
      %p121 = scmp.eq.s32.totalorder %s13, 0
      %p122 = por %p120, %p121
      %p123 = scmp.ne.s32.totalorder %s112, %s115
      %p124 = scmp.eq.s32.totalorder %s18, 1
      %p125 = por %p123, %p124
      %p126 = scmp.ne.s32.totalorder %s115, %s116
      %p127 = scmp.eq.s32.totalorder %s18, 0
      %p128 = por %p126, %p127
      %p129 = scmp.ne.s32.totalorder %s115, %s116
      %p130 = scmp.eq.s32.totalorder %s19, 1
      %p131 = por %p129, %p130
      %p133 = scmp.ne.s32.totalorder %s116, %s132
      %p134 = scmp.eq.s32.totalorder %s19, 0
      %p135 = por %p133, %p134
      %p136 = scmp.le.s32.totalorder 1, %s13
      %p137 = scmp.lt.s32.totalorder %s13, 3
      %p138 = pnand %p136, %p137
      %p139 = pneg %p138
      // Predicated region
      $region9: #{tpu_custom_call.1} parent=5 // pred_check
        _
      $region10: #{tpu_custom_call.1} parent=5 // pred_check_branch
        %141 = sbr.rel (%p138) target = $region12
      $region11: #{tpu_custom_call.1} parent=5 // pred_region
        %s142 = ssub.s32 %s13, 1
        // Predicated region
        $region13: #{tpu_custom_call.1} parent=11 // pred_check
          %p143 = pneg %p60
        $region14: #{tpu_custom_call.1} parent=11 // pred_check_branch
          %145 = sbr.rel (%p143) target = $region16
        $region15: #{tpu_custom_call.1} parent=11 // pred_region
          _
        $region16: #{tpu_custom_call.1} parent=11 // pred_fallthru
          _
        // Predicated region
        $region17: #{tpu_custom_call.1} parent=11 // pred_check
          %p146 = pneg %p81
        $region18: #{tpu_custom_call.1} parent=11 // pred_check_branch
          %148 = sbr.rel (%p146) target = $region20
        $region19: #{tpu_custom_call.1} parent=11 // pred_region
          _
        $region20: #{tpu_custom_call.1} parent=11 // pred_fallthru
          _
        // Predicated region
        $region21: #{tpu_custom_call.1} parent=11 // pred_check
          %p149 = pneg %p102
        $region22: #{tpu_custom_call.1} parent=11 // pred_check_branch
          %151 = sbr.rel (%p149) target = $region24
        $region23: #{tpu_custom_call.1} parent=11 // pred_region
          _
        $region24: #{tpu_custom_call.1} parent=11 // pred_fallthru
          _
      $region12: #{tpu_custom_call.1} parent=5 // pred_fallthru
        _
      %p152 = scmp.lt.s32.totalorder %s13, 2
      // Predicated region
      $region25: #{tpu_custom_call.1} parent=5 // pred_check
        %p153 = pneg %p152
      $region26: #{tpu_custom_call.1} parent=5 // pred_check_branch
        %155 = sbr.rel (%p153) target = $region28
      $region27: #{tpu_custom_call.1} parent=5 // pred_region
        // Predicated region
        $region29: #{tpu_custom_call.1} parent=27 // pred_check
          %p156 = pneg %p33
        $region30: #{tpu_custom_call.1} parent=27 // pred_check_branch
          %158 = sbr.rel (%p156) target = $region32
        $region31: #{tpu_custom_call.1} parent=27 // pred_region
          %p159 = scmp.lt.s32.totalorder %s13, 1
          %s160 = scalar_select %p159, %s13, 1
          %s161 = smul.addr %s160, 8
          %s162 = scalar_lea.vmem %s0, %s161
        $region32: #{tpu_custom_call.1} parent=27 // pred_fallthru
          _
      $region28: #{tpu_custom_call.1} parent=5 // pred_fallthru
        _
      %p163 = scmp.le.s32.totalorder 1, %s13
      %p164 = scmp.lt.s32.totalorder %s13, 3
      %p165 = pnand %p163, %p164
      %p166 = pneg %p165
      // Predicated region
      $region33: #{tpu_custom_call.1} parent=5 // pred_check
        _
      $region34: #{tpu_custom_call.1} parent=5 // pred_check_branch
        %168 = sbr.rel (%p165) target = $region36
      $region35: #{tpu_custom_call.1} parent=5 // pred_region
        %s169 = ssub.s32 %s13, 1
        %p170 = scmp.lt.s32.totalorder %s18, 1
        %s171 = scalar_select %p170, %s18, 1
        %s172 = smul.addr %s171, 8
        %s173 = scalar_lea.vmem %s0, %s172
        %p174 = pneg %p39
        %p175 = pneg %p36
        %p176 = pneg %p60
        %p177 = pneg %p57
        %p178 = pneg %p81
        %p179 = pneg %p78
        %p180 = pneg %p102
        %p181 = pneg %p99
        %p182 = pneg %p128
        %p183 = pneg %p125
        %s184 = sand.u32 %s115, 1
        %s185 = scalar_lea.sflag [#allocation3], %s184
        %s186 = sand.u32 %s115, 1
        %s187 = smul.addr %s186, 8
        %s188 = scalar_lea.vmem [#allocation2], %s187
        %p189 = scmp.lt.s32.totalorder %s18, 1
        %s190 = scalar_select %p189, %s18, 1
        %s191 = smul.addr %s190, 8
        %s192 = scalar_lea.vmem %s0, %s191
        %v193 = vld [vmem:[%s192] sm:$0xff]
        %v194 = vld [vmem:[%s1] sm:$0xff]
        %v195 = vld [vmem:[%s1 + $0x8] sm:$0xff]
        %v196 = vld [vmem:[%s1 + $0x10] sm:$0xff]
        %v197 = vld [vmem:[%s1 + $0x18] sm:$0xff]
        %v198 = vld [vmem:[%s1 + $0x20] sm:$0xff]
        %v199 = vld [vmem:[%s1 + $0x28] sm:$0xff]
        %v200 = vld [vmem:[%s1 + $0x30] sm:$0xff]
        %v201 = vld [vmem:[%s1 + $0x38] sm:$0xff]
        %v202 = vld [vmem:[%s1 + $0x40] sm:$0xff]
        %v203 = vld [vmem:[%s1 + $0x48] sm:$0xff]
        %v204 = vld [vmem:[%s1 + $0x50] sm:$0xff]
        %v205 = vld [vmem:[%s1 + $0x58] sm:$0xff]
        %v206 = vld [vmem:[%s1 + $0x60] sm:$0xff]
        %v207 = vld [vmem:[%s1 + $0x68] sm:$0xff]
        %v208 = vld [vmem:[%s1 + $0x70] sm:$0xff]
        %v209 = vld [vmem:[%s1 + $0x78] sm:$0xff]
        %210 = vmatpush.msra.mxu0 %v209
        %211 = vmatpush.msra.mxu0 %v208
        %212 = vmatpush.msra.mxu0 %v207
        %213 = vmatpush.msra.mxu0 %v206
        %214 = vmatpush.msra.mxu0 %v205
        %215 = vmatpush.msra.mxu0 %v204
        %216 = vmatpush.msra.mxu0 %v203
        %217 = vmatpush.msra.mxu0 %v202
        %218 = vmatpush.msra.mxu0 %v201
        %219 = vmatpush.msra.mxu0 %v200
        %220 = vmatpush.msra.mxu0 %v199
        %221 = vmatpush.msra.mxu0 %v198
        %222 = vmatpush.msra.mxu0 %v197
        %223 = vmatpush.msra.mxu0 %v196
        %224 = vmatpush.msra.mxu0 %v195
        %225 = vmatpush.msra.mxu0 %v194
        %226 = vmatmul.f32.gmra.mxu0 %v193
        %v227 = vpop.f32.mrf.mxu0
        %v228 = vadd.f32 0.0, %v227
        %229 = vdwg.mxu0
        %231 = vrot.lane.b32.xlu0 %v228, 120
        %v232 = vpop.permute.xlu0 %231
        %233 = vrot.lane.b32.xlu0 %v228, 112
        %v234 = vpop.permute.xlu0 %233
        %235 = vrot.lane.b32.xlu0 %v228, 104
        %v236 = vpop.permute.xlu0 %235
        %v237 = vlaneseq
        %v238 = vshrl.u32 %v237, 7
        %v239 = vlaneseq
        %v240 = vand.u32 %v239, 127
        %vm241 = vcmp.ge.s32.totalorder %v238, %v240
        %242 = vrot.lane.b32.xlu0 %v228, 96
        %v243 = vpop.permute.xlu0 %242
        %244 = vrot.lane.b32.xlu0 %v232, 96
        %v245 = vpop.permute.xlu0 %244
        %246 = vrot.lane.b32.xlu0 %v234, 96
        %v247 = vpop.permute.xlu0 %246
        %248 = vrot.lane.b32.xlu0 %v236, 96
        %v249 = vpop.permute.xlu0 %248
        %254 = vxpose.xlu0.b32.start [1/16] %v243, 128
        %255 = vxpose.xlu0.b32.cont [2/16] 0.0, 128
        %256 = vxpose.xlu0.b32.cont [3/16] 0.0, 128
        %257 = vxpose.xlu0.b32.cont [4/16] 0.0, 128
        %258 = vxpose.xlu0.b32.cont [5/16] 0.0, 128
        %259 = vxpose.xlu0.b32.cont [6/16] 0.0, 128
        %260 = vxpose.xlu0.b32.cont [7/16] 0.0, 128
        %261 = vxpose.xlu0.b32.cont [8/16] 0.0, 128
        %262 = vxpose.xlu0.b32.cont [9/16] 0.0, 128
        %263 = vxpose.xlu0.b32.cont [10/16] 0.0, 128
        %264 = vxpose.xlu0.b32.cont [11/16] 0.0, 128
        %265 = vxpose.xlu0.b32.cont [12/16] 0.0, 128
        %266 = vxpose.xlu0.b32.cont [13/16] 0.0, 128
        %267 = vxpose.xlu0.b32.cont [14/16] 0.0, 128
        %268 = vxpose.xlu0.b32.cont [15/16] 0.0, 128
        %269 = vxpose.xlu0.b32.end [16/16] 0.0, 128
        %v270 = vpop.trf.xlu0
        %v271 = vpop.trf.xlu0
        %v272 = vpop.trf.xlu0
        %v273 = vpop.trf.xlu0
        %v274 = vpop.trf.xlu0
        %v275 = vpop.trf.xlu0
        %v276 = vpop.trf.xlu0
        %v277 = vpop.trf.xlu0
        %v278 = vpop.trf.xlu0
        %v279 = vpop.trf.xlu0
        %v280 = vpop.trf.xlu0
        %v281 = vpop.trf.xlu0
        %v282 = vpop.trf.xlu0
        %v283 = vpop.trf.xlu0
        %v284 = vpop.trf.xlu0
        %v285 = vpop.trf.xlu0
        %286 = vxpose.xlu0.b32.start [1/16] %v245, 128
        %287 = vxpose.xlu0.b32.cont [2/16] 0.0, 128
        %288 = vxpose.xlu0.b32.cont [3/16] 0.0, 128
        %289 = vxpose.xlu0.b32.cont [4/16] 0.0, 128
        %290 = vxpose.xlu0.b32.cont [5/16] 0.0, 128
        %291 = vxpose.xlu0.b32.cont [6/16] 0.0, 128
        %292 = vxpose.xlu0.b32.cont [7/16] 0.0, 128
        %293 = vxpose.xlu0.b32.cont [8/16] 0.0, 128
        %294 = vxpose.xlu0.b32.cont [9/16] 0.0, 128
        %295 = vxpose.xlu0.b32.cont [10/16] 0.0, 128
        %296 = vxpose.xlu0.b32.cont [11/16] 0.0, 128
        %297 = vxpose.xlu0.b32.cont [12/16] 0.0, 128
        %298 = vxpose.xlu0.b32.cont [13/16] 0.0, 128
        %299 = vxpose.xlu0.b32.cont [14/16] 0.0, 128
        %300 = vxpose.xlu0.b32.cont [15/16] 0.0, 128
        %301 = vxpose.xlu0.b32.end [16/16] 0.0, 128
        %v302 = vpop.trf.xlu0
        %v303 = vpop.trf.xlu0
        %v304 = vpop.trf.xlu0
        %v305 = vpop.trf.xlu0
        %v306 = vpop.trf.xlu0
        %v307 = vpop.trf.xlu0
        %v308 = vpop.trf.xlu0
        %v309 = vpop.trf.xlu0
        %v310 = vpop.trf.xlu0
        %v311 = vpop.trf.xlu0
        %v312 = vpop.trf.xlu0
        %v313 = vpop.trf.xlu0
        %v314 = vpop.trf.xlu0
        %v315 = vpop.trf.xlu0
        %v316 = vpop.trf.xlu0
        %v317 = vpop.trf.xlu0
        %318 = vxpose.xlu0.b32.start [1/16] %v247, 128
        %319 = vxpose.xlu0.b32.cont [2/16] 0.0, 128
        %320 = vxpose.xlu0.b32.cont [3/16] 0.0, 128
        %321 = vxpose.xlu0.b32.cont [4/16] 0.0, 128
        %322 = vxpose.xlu0.b32.cont [5/16] 0.0, 128
        %323 = vxpose.xlu0.b32.cont [6/16] 0.0, 128
        %324 = vxpose.xlu0.b32.cont [7/16] 0.0, 128
        %325 = vxpose.xlu0.b32.cont [8/16] 0.0, 128
        %326 = vxpose.xlu0.b32.cont [9/16] 0.0, 128
        %327 = vxpose.xlu0.b32.cont [10/16] 0.0, 128
        %328 = vxpose.xlu0.b32.cont [11/16] 0.0, 128
        %329 = vxpose.xlu0.b32.cont [12/16] 0.0, 128
        %330 = vxpose.xlu0.b32.cont [13/16] 0.0, 128
        %331 = vxpose.xlu0.b32.cont [14/16] 0.0, 128
        %332 = vxpose.xlu0.b32.cont [15/16] 0.0, 128
        %333 = vxpose.xlu0.b32.end [16/16] 0.0, 128
        %v334 = vpop.trf.xlu0
        %v335 = vpop.trf.xlu0
        %v336 = vpop.trf.xlu0
        %v337 = vpop.trf.xlu0
        %v338 = vpop.trf.xlu0
        %v339 = vpop.trf.xlu0
        %v340 = vpop.trf.xlu0
        %v341 = vpop.trf.xlu0
        %v342 = vpop.trf.xlu0
        %v343 = vpop.trf.xlu0
        %v344 = vpop.trf.xlu0
        %v345 = vpop.trf.xlu0
        %v346 = vpop.trf.xlu0
        %v347 = vpop.trf.xlu0
        %v348 = vpop.trf.xlu0
        %v349 = vpop.trf.xlu0
        %350 = vxpose.xlu0.b32.start [1/16] %v249, 128
        %351 = vxpose.xlu0.b32.cont [2/16] 0.0, 128
        %352 = vxpose.xlu0.b32.cont [3/16] 0.0, 128
        %353 = vxpose.xlu0.b32.cont [4/16] 0.0, 128
        %354 = vxpose.xlu0.b32.cont [5/16] 0.0, 128
        %355 = vxpose.xlu0.b32.cont [6/16] 0.0, 128
        %356 = vxpose.xlu0.b32.cont [7/16] 0.0, 128
        %357 = vxpose.xlu0.b32.cont [8/16] 0.0, 128
        %358 = vxpose.xlu0.b32.cont [9/16] 0.0, 128
        %359 = vxpose.xlu0.b32.cont [10/16] 0.0, 128
        %360 = vxpose.xlu0.b32.cont [11/16] 0.0, 128
        %361 = vxpose.xlu0.b32.cont [12/16] 0.0, 128
        %362 = vxpose.xlu0.b32.cont [13/16] 0.0, 128
        %363 = vxpose.xlu0.b32.cont [14/16] 0.0, 128
        %364 = vxpose.xlu0.b32.cont [15/16] 0.0, 128
        %365 = vxpose.xlu0.b32.end [16/16] 0.0, 128
        %v366 = vpop.trf.xlu0
        %v367 = vpop.trf.xlu0
        %v368 = vpop.trf.xlu0
        %v369 = vpop.trf.xlu0
        %v370 = vpop.trf.xlu0
        %v371 = vpop.trf.xlu0
        %v372 = vpop.trf.xlu0
        %v373 = vpop.trf.xlu0
        %v374 = vpop.trf.xlu0
        %v375 = vpop.trf.xlu0
        %v376 = vpop.trf.xlu0
        %v377 = vpop.trf.xlu0
        %v378 = vpop.trf.xlu0
        %v379 = vpop.trf.xlu0
        %v380 = vpop.trf.xlu0
        %v381 = vpop.trf.xlu0
        %vm382 = vcmask 64512
        %v383 = vsel %vm382, %v228, 0
        %385 = vmatpush.msra.mxu0 0.0
        %386 = vmatpush.msra.mxu0 0.0
        %387 = vmatpush.msra.mxu0 0.0
        %388 = vmatpush.msra.mxu0 0.0
        %389 = vmatpush.msra.mxu0 0.0
        %390 = vmatpush.msra.mxu0 0.0
        %391 = vmatpush.msra.mxu0 0.0
        %392 = vmatpush.msra.mxu0 0.0
        %393 = vmatpush.msra.mxu0 0.0
        %394 = vmatpush.msra.mxu0 0.0
        %395 = vmatpush.msra.mxu0 0.0
        %396 = vmatpush.msra.mxu0 0.0
        %397 = vmatpush.msra.mxu0 0.0
        %398 = vmatpush.msra.mxu0 0.0
        %399 = vmatpush.msra.mxu0 0.0
        %400 = vmatpush.msra.mxu0 %v270
        %401 = vmatmul.f32.gmra.mxu0 %v383
        %v402 = vpop.f32.mrf.mxu0
        %v403 = vadd.f32 0.0, %v402
        %404 = vdwg.mxu0
        %v405 = vsel %vm382, %v232, 0
        %407 = vmatpush.msra.mxu0 0.0
        %408 = vmatpush.msra.mxu0 0.0
        %409 = vmatpush.msra.mxu0 0.0
        %410 = vmatpush.msra.mxu0 0.0
        %411 = vmatpush.msra.mxu0 0.0
        %412 = vmatpush.msra.mxu0 0.0
        %413 = vmatpush.msra.mxu0 0.0
        %414 = vmatpush.msra.mxu0 0.0
        %415 = vmatpush.msra.mxu0 0.0
        %416 = vmatpush.msra.mxu0 0.0
        %417 = vmatpush.msra.mxu0 0.0
        %418 = vmatpush.msra.mxu0 0.0
        %419 = vmatpush.msra.mxu0 0.0
        %420 = vmatpush.msra.mxu0 0.0
        %421 = vmatpush.msra.mxu0 0.0
        %422 = vmatpush.msra.mxu0 %v302
        %423 = vmatmul.f32.gmra.mxu0 %v405
        %v424 = vpop.f32.mrf.mxu0
        %v425 = vadd.f32 0.0, %v424
        %426 = vdwg.mxu0
        %v427 = vsel %vm382, %v234, 0
        %429 = vmatpush.msra.mxu0 0.0
        %430 = vmatpush.msra.mxu0 0.0
        %431 = vmatpush.msra.mxu0 0.0
        %432 = vmatpush.msra.mxu0 0.0
        %433 = vmatpush.msra.mxu0 0.0
        %434 = vmatpush.msra.mxu0 0.0
        %435 = vmatpush.msra.mxu0 0.0
        %436 = vmatpush.msra.mxu0 0.0
        %437 = vmatpush.msra.mxu0 0.0
        %438 = vmatpush.msra.mxu0 0.0
        %439 = vmatpush.msra.mxu0 0.0
        %440 = vmatpush.msra.mxu0 0.0
        %441 = vmatpush.msra.mxu0 0.0
        %442 = vmatpush.msra.mxu0 0.0
        %443 = vmatpush.msra.mxu0 0.0
        %444 = vmatpush.msra.mxu0 %v334
        %445 = vmatmul.f32.gmra.mxu0 %v427
        %v446 = vpop.f32.mrf.mxu0
        %v447 = vadd.f32 0.0, %v446
        %448 = vdwg.mxu0
        %v449 = vsel %vm382, %v236, 0
        %451 = vmatpush.msra.mxu0 0.0
        %452 = vmatpush.msra.mxu0 0.0
        %453 = vmatpush.msra.mxu0 0.0
        %454 = vmatpush.msra.mxu0 0.0
        %455 = vmatpush.msra.mxu0 0.0
        %456 = vmatpush.msra.mxu0 0.0
        %457 = vmatpush.msra.mxu0 0.0
        %458 = vmatpush.msra.mxu0 0.0
        %459 = vmatpush.msra.mxu0 0.0
        %460 = vmatpush.msra.mxu0 0.0
        %461 = vmatpush.msra.mxu0 0.0
        %462 = vmatpush.msra.mxu0 0.0
        %463 = vmatpush.msra.mxu0 0.0
        %464 = vmatpush.msra.mxu0 0.0
        %465 = vmatpush.msra.mxu0 0.0
        %466 = vmatpush.msra.mxu0 %v366
        %467 = vmatmul.f32.gmra.mxu0 %v449
        %v468 = vpop.f32.mrf.mxu0
        %v469 = vadd.f32 0.0, %v468
        %470 = vdwg.mxu0
        %v471 = vsel %vm241, 1, 0
        %vm472 = vcmp.eq.s32.totalorder %v471, 1
        %v473 = vsel %vm472, %v403, -1e+30
        %v474 = vsel %vm472, %v425, -1e+30
        %v475 = vsel %vm472, %v447, -1e+30
        %v476 = vsel %vm472, %v469, -1e+30
        %v477 = vsel %vm382, %v473, -inf
        %478 = vmax.xlane.f32.xlu0 %v477
        %v479 = vpop.xlane.xlu0 %478
        %v480 = vsel %vm382, %v474, -inf
        %481 = vmax.xlane.f32.xlu0 %v480
        %v482 = vpop.xlane.xlu0 %481
        %v483 = vsel %vm382, %v475, -inf
        %484 = vmax.xlane.f32.xlu0 %v483
        %v485 = vpop.xlane.xlu0 %484
        %v486 = vsel %vm382, %v476, -inf
        %487 = vmax.xlane.f32.xlu0 %v486
        %v488 = vpop.xlane.xlu0 %487
        %v489 = vsub.f32 %v473, %v479
        %v490 = vsub.f32 %v474, %v482
        %v491 = vsub.f32 %v475, %v485
        %v492 = vsub.f32 %v476, %v488
        %v493 = vmul.f32 %v489, 1.442695
        %v494 = vpow.pop %v493
        %v495 = vmul.f32 %v490, 1.442695
        %v496 = vpow.pop %v495
        %v497 = vmul.f32 %v491, 1.442695
        %v498 = vpow.pop %v497
        %v499 = vmul.f32 %v492, 1.442695
        %v500 = vpow.pop %v499
        %v501 = vsel %vm382, %v494, 0.0
        %502 = vadd.xlane.f32.xlu0 %v501
        %v503 = vpop.xlane.xlu0 %502
        %v504 = vsel %vm382, %v496, 0.0
        %505 = vadd.xlane.f32.xlu0 %v504
        %v506 = vpop.xlane.xlu0 %505
        %v507 = vsel %vm382, %v498, 0.0
        %508 = vadd.xlane.f32.xlu0 %v507
        %v509 = vpop.xlane.xlu0 %508
        %v510 = vsel %vm382, %v500, 0.0
        %511 = vadd.xlane.f32.xlu0 %v510
        %v512 = vpop.xlane.xlu0 %511
        %v513 = vrcp.pop %v503
        %v514 = vmul.f32 %v503, %v513
        %v515 = vsub.f32 1.0, %v514
        %v516 = vmul.f32 %v513, %v515
        %v517 = vadd.f32 %v513, %v516
        %vm518 = vweird.f32 %v503
        %vm519 = vweird.f32 %v513
        %vm520 = vmor %vm518, %vm519
        %v521 = vsel %vm520, %v513, %v517
        %v522 = vand.u32 2147483647, %v503
        %vm523 = vcmp.eq.f32.partialorder %v522, 8.507059e+37
        %v524 = vand.u32 %v503, 2147483648
        %v525 = vor.u32 1.1754944e-38, %v524
        %v526 = vsel %vm523, %v525, %v521
        %v527 = vrcp.pop %v506
        %v528 = vmul.f32 %v506, %v527
        %v529 = vsub.f32 1.0, %v528
        %v530 = vmul.f32 %v527, %v529
        %v531 = vadd.f32 %v527, %v530
        %vm532 = vweird.f32 %v506
        %vm533 = vweird.f32 %v527
        %vm534 = vmor %vm532, %vm533
        %v535 = vsel %vm534, %v527, %v531
        %v536 = vand.u32 2147483647, %v506
        %vm537 = vcmp.eq.f32.partialorder %v536, 8.507059e+37
        %v538 = vand.u32 %v506, 2147483648
        %v539 = vor.u32 1.1754944e-38, %v538
        %v540 = vsel %vm537, %v539, %v535
        %v541 = vrcp.pop %v509
        %v542 = vmul.f32 %v509, %v541
        %v543 = vsub.f32 1.0, %v542
        %v544 = vmul.f32 %v541, %v543
        %v545 = vadd.f32 %v541, %v544
        %vm546 = vweird.f32 %v509
        %vm547 = vweird.f32 %v541
        %vm548 = vmor %vm546, %vm547
        %v549 = vsel %vm548, %v541, %v545
        %v550 = vand.u32 2147483647, %v509
        %vm551 = vcmp.eq.f32.partialorder %v550, 8.507059e+37
        %v552 = vand.u32 %v509, 2147483648
        %v553 = vor.u32 1.1754944e-38, %v552
        %v554 = vsel %vm551, %v553, %v549
        %v555 = vrcp.pop %v512
        %v556 = vmul.f32 %v512, %v555
        %v557 = vsub.f32 1.0, %v556
        %v558 = vmul.f32 %v555, %v557
        %v559 = vadd.f32 %v555, %v558
        %vm560 = vweird.f32 %v512
        %vm561 = vweird.f32 %v555
        %vm562 = vmor %vm560, %vm561
        %v563 = vsel %vm562, %v555, %v559
        %v564 = vand.u32 2147483647, %v512
        %vm565 = vcmp.eq.f32.partialorder %v564, 8.507059e+37
        %v566 = vand.u32 %v512, 2147483648
        %v567 = vor.u32 1.1754944e-38, %v566
        %v568 = vsel %vm565, %v567, %v563
        %v569 = vmul.f32 %v494, %v526
        %v570 = vmul.f32 %v496, %v540
        %v571 = vmul.f32 %v498, %v554
        %v572 = vmul.f32 %v500, %v568
        %573 = vrot.lane.b32.xlu0 %v228, 64
        %v574 = vpop.permute.xlu0 %573
        %575 = vrot.lane.b32.xlu0 %v232, 64
        %v576 = vpop.permute.xlu0 %575
        %577 = vrot.lane.b32.xlu0 %v234, 64
        %v578 = vpop.permute.xlu0 %577
        %579 = vrot.lane.b32.xlu0 %v236, 64
        %v580 = vpop.permute.xlu0 %579
        %585 = vxpose.xlu0.b32.start [1/16] %v574, 128
        %586 = vxpose.xlu0.b32.cont [2/16] 0.0, 128
        %587 = vxpose.xlu0.b32.cont [3/16] 0.0, 128
        %588 = vxpose.xlu0.b32.cont [4/16] 0.0, 128
        %589 = vxpose.xlu0.b32.cont [5/16] 0.0, 128
        %590 = vxpose.xlu0.b32.cont [6/16] 0.0, 128
        %591 = vxpose.xlu0.b32.cont [7/16] 0.0, 128
        %592 = vxpose.xlu0.b32.cont [8/16] 0.0, 128
        %593 = vxpose.xlu0.b32.cont [9/16] 0.0, 128
        %594 = vxpose.xlu0.b32.cont [10/16] 0.0, 128
        %595 = vxpose.xlu0.b32.cont [11/16] 0.0, 128
        %596 = vxpose.xlu0.b32.cont [12/16] 0.0, 128
        %597 = vxpose.xlu0.b32.cont [13/16] 0.0, 128
        %598 = vxpose.xlu0.b32.cont [14/16] 0.0, 128
        %599 = vxpose.xlu0.b32.cont [15/16] 0.0, 128
        %600 = vxpose.xlu0.b32.end [16/16] 0.0, 128
        %v601 = vpop.trf.xlu0
        %v602 = vpop.trf.xlu0
        %v603 = vpop.trf.xlu0
        %v604 = vpop.trf.xlu0
        %v605 = vpop.trf.xlu0
        %v606 = vpop.trf.xlu0
        %v607 = vpop.trf.xlu0
        %v608 = vpop.trf.xlu0
        %v609 = vpop.trf.xlu0
        %v610 = vpop.trf.xlu0
        %v611 = vpop.trf.xlu0
        %v612 = vpop.trf.xlu0
        %v613 = vpop.trf.xlu0
        %v614 = vpop.trf.xlu0
        %v615 = vpop.trf.xlu0
        %v616 = vpop.trf.xlu0
        %617 = vxpose.xlu0.b32.start [1/16] %v576, 128
        %618 = vxpose.xlu0.b32.cont [2/16] 0.0, 128
        %619 = vxpose.xlu0.b32.cont [3/16] 0.0, 128
        %620 = vxpose.xlu0.b32.cont [4/16] 0.0, 128
        %621 = vxpose.xlu0.b32.cont [5/16] 0.0, 128
        %622 = vxpose.xlu0.b32.cont [6/16] 0.0, 128
        %623 = vxpose.xlu0.b32.cont [7/16] 0.0, 128
        %624 = vxpose.xlu0.b32.cont [8/16] 0.0, 128
        %625 = vxpose.xlu0.b32.cont [9/16] 0.0, 128
        %626 = vxpose.xlu0.b32.cont [10/16] 0.0, 128
        %627 = vxpose.xlu0.b32.cont [11/16] 0.0, 128
        %628 = vxpose.xlu0.b32.cont [12/16] 0.0, 128
        %629 = vxpose.xlu0.b32.cont [13/16] 0.0, 128
        %630 = vxpose.xlu0.b32.cont [14/16] 0.0, 128
        %631 = vxpose.xlu0.b32.cont [15/16] 0.0, 128
        %632 = vxpose.xlu0.b32.end [16/16] 0.0, 128
        %v633 = vpop.trf.xlu0
        %v634 = vpop.trf.xlu0
        %v635 = vpop.trf.xlu0
        %v636 = vpop.trf.xlu0
        %v637 = vpop.trf.xlu0
        %v638 = vpop.trf.xlu0
        %v639 = vpop.trf.xlu0
        %v640 = vpop.trf.xlu0
        %v641 = vpop.trf.xlu0
        %v642 = vpop.trf.xlu0
        %v643 = vpop.trf.xlu0
        %v644 = vpop.trf.xlu0
        %v645 = vpop.trf.xlu0
        %v646 = vpop.trf.xlu0
        %v647 = vpop.trf.xlu0
        %v648 = vpop.trf.xlu0
        %649 = vxpose.xlu0.b32.start [1/16] %v578, 128
        %650 = vxpose.xlu0.b32.cont [2/16] 0.0, 128
        %651 = vxpose.xlu0.b32.cont [3/16] 0.0, 128
        %652 = vxpose.xlu0.b32.cont [4/16] 0.0, 128
        %653 = vxpose.xlu0.b32.cont [5/16] 0.0, 128
        %654 = vxpose.xlu0.b32.cont [6/16] 0.0, 128
        %655 = vxpose.xlu0.b32.cont [7/16] 0.0, 128
        %656 = vxpose.xlu0.b32.cont [8/16] 0.0, 128
        %657 = vxpose.xlu0.b32.cont [9/16] 0.0, 128
        %658 = vxpose.xlu0.b32.cont [10/16] 0.0, 128
        %659 = vxpose.xlu0.b32.cont [11/16] 0.0, 128
        %660 = vxpose.xlu0.b32.cont [12/16] 0.0, 128
        %661 = vxpose.xlu0.b32.cont [13/16] 0.0, 128
        %662 = vxpose.xlu0.b32.cont [14/16] 0.0, 128
        %663 = vxpose.xlu0.b32.cont [15/16] 0.0, 128
        %664 = vxpose.xlu0.b32.end [16/16] 0.0, 128
        %v665 = vpop.trf.xlu0
        %v666 = vpop.trf.xlu0
        %v667 = vpop.trf.xlu0
        %v668 = vpop.trf.xlu0
        %v669 = vpop.trf.xlu0
        %v670 = vpop.trf.xlu0
        %v671 = vpop.trf.xlu0
        %v672 = vpop.trf.xlu0
        %v673 = vpop.trf.xlu0
        %v674 = vpop.trf.xlu0
        %v675 = vpop.trf.xlu0
        %v676 = vpop.trf.xlu0
        %v677 = vpop.trf.xlu0
        %v678 = vpop.trf.xlu0
        %v679 = vpop.trf.xlu0
        %v680 = vpop.trf.xlu0
        %681 = vxpose.xlu0.b32.start [1/16] %v580, 128
        %682 = vxpose.xlu0.b32.cont [2/16] 0.0, 128
        %683 = vxpose.xlu0.b32.cont [3/16] 0.0, 128
        %684 = vxpose.xlu0.b32.cont [4/16] 0.0, 128
        %685 = vxpose.xlu0.b32.cont [5/16] 0.0, 128
        %686 = vxpose.xlu0.b32.cont [6/16] 0.0, 128
        %687 = vxpose.xlu0.b32.cont [7/16] 0.0, 128
        %688 = vxpose.xlu0.b32.cont [8/16] 0.0, 128
        %689 = vxpose.xlu0.b32.cont [9/16] 0.0, 128
        %690 = vxpose.xlu0.b32.cont [10/16] 0.0, 128
        %691 = vxpose.xlu0.b32.cont [11/16] 0.0, 128
        %692 = vxpose.xlu0.b32.cont [12/16] 0.0, 128
        %693 = vxpose.xlu0.b32.cont [13/16] 0.0, 128
        %694 = vxpose.xlu0.b32.cont [14/16] 0.0, 128
        %695 = vxpose.xlu0.b32.cont [15/16] 0.0, 128
        %696 = vxpose.xlu0.b32.end [16/16] 0.0, 128
        %v697 = vpop.trf.xlu0
        %v698 = vpop.trf.xlu0
        %v699 = vpop.trf.xlu0
        %v700 = vpop.trf.xlu0
        %v701 = vpop.trf.xlu0
        %v702 = vpop.trf.xlu0
        %v703 = vpop.trf.xlu0
        %v704 = vpop.trf.xlu0
        %v705 = vpop.trf.xlu0
        %v706 = vpop.trf.xlu0
        %v707 = vpop.trf.xlu0
        %v708 = vpop.trf.xlu0
        %v709 = vpop.trf.xlu0
        %v710 = vpop.trf.xlu0
        %v711 = vpop.trf.xlu0
        %v712 = vpop.trf.xlu0
        %v714 = vsel %vm382, %v601, 0
        %v717 = vsel %vm382, %v569, 0
        %719 = vmatpush.xpose.msra.mxu0 0.0
        %720 = vmatpush.xpose.msra.mxu0 0.0
        %721 = vmatpush.xpose.msra.mxu0 0.0
        %722 = vmatpush.xpose.msra.mxu0 0.0
        %723 = vmatpush.xpose.msra.mxu0 0.0
        %724 = vmatpush.xpose.msra.mxu0 0.0
        %725 = vmatpush.xpose.msra.mxu0 0.0
        %726 = vmatpush.xpose.msra.mxu0 0.0
        %727 = vmatpush.xpose.msra.mxu0 0.0
        %728 = vmatpush.xpose.msra.mxu0 0.0
        %729 = vmatpush.xpose.msra.mxu0 0.0
        %730 = vmatpush.xpose.msra.mxu0 0.0
        %731 = vmatpush.xpose.msra.mxu0 0.0
        %732 = vmatpush.xpose.msra.mxu0 0.0
        %733 = vmatpush.xpose.msra.mxu0 0.0
        %734 = vmatpush.xpose.msra.mxu0 %v717
        %735 = vmatmul.f32.gmra.mxu0 %v714
        %v736 = vpop.f32.mrf.mxu0
        %v737 = vadd.f32 0.0, %v736
        %738 = vdwg.mxu0
        %v740 = vsel %vm382, %v633, 0
        %v743 = vsel %vm382, %v570, 0
        %745 = vmatpush.xpose.msra.mxu0 0.0
        %746 = vmatpush.xpose.msra.mxu0 0.0
        %747 = vmatpush.xpose.msra.mxu0 0.0
        %748 = vmatpush.xpose.msra.mxu0 0.0
        %749 = vmatpush.xpose.msra.mxu0 0.0
        %750 = vmatpush.xpose.msra.mxu0 0.0
        %751 = vmatpush.xpose.msra.mxu0 0.0
        %752 = vmatpush.xpose.msra.mxu0 0.0
        %753 = vmatpush.xpose.msra.mxu0 0.0
        %754 = vmatpush.xpose.msra.mxu0 0.0
        %755 = vmatpush.xpose.msra.mxu0 0.0
        %756 = vmatpush.xpose.msra.mxu0 0.0
        %757 = vmatpush.xpose.msra.mxu0 0.0
        %758 = vmatpush.xpose.msra.mxu0 0.0
        %759 = vmatpush.xpose.msra.mxu0 0.0
        %760 = vmatpush.xpose.msra.mxu0 %v743
        %761 = vmatmul.f32.gmra.mxu0 %v740
        %v762 = vpop.f32.mrf.mxu0
        %v763 = vadd.f32 0.0, %v762
        %764 = vdwg.mxu0
        %v766 = vsel %vm382, %v665, 0
        %v769 = vsel %vm382, %v571, 0
        %771 = vmatpush.xpose.msra.mxu0 0.0
        %772 = vmatpush.xpose.msra.mxu0 0.0
        %773 = vmatpush.xpose.msra.mxu0 0.0
        %774 = vmatpush.xpose.msra.mxu0 0.0
        %775 = vmatpush.xpose.msra.mxu0 0.0
        %776 = vmatpush.xpose.msra.mxu0 0.0
        %777 = vmatpush.xpose.msra.mxu0 0.0
        %778 = vmatpush.xpose.msra.mxu0 0.0
        %779 = vmatpush.xpose.msra.mxu0 0.0
        %780 = vmatpush.xpose.msra.mxu0 0.0
        %781 = vmatpush.xpose.msra.mxu0 0.0
        %782 = vmatpush.xpose.msra.mxu0 0.0
        %783 = vmatpush.xpose.msra.mxu0 0.0
        %784 = vmatpush.xpose.msra.mxu0 0.0
        %785 = vmatpush.xpose.msra.mxu0 0.0
        %786 = vmatpush.xpose.msra.mxu0 %v769
        %787 = vmatmul.f32.gmra.mxu0 %v766
        %v788 = vpop.f32.mrf.mxu0
        %v789 = vadd.f32 0.0, %v788
        %790 = vdwg.mxu0
        %v792 = vsel %vm382, %v697, 0
        %v795 = vsel %vm382, %v572, 0
        %797 = vmatpush.xpose.msra.mxu0 0.0
        %798 = vmatpush.xpose.msra.mxu0 0.0
        %799 = vmatpush.xpose.msra.mxu0 0.0
        %800 = vmatpush.xpose.msra.mxu0 0.0
        %801 = vmatpush.xpose.msra.mxu0 0.0
        %802 = vmatpush.xpose.msra.mxu0 0.0
        %803 = vmatpush.xpose.msra.mxu0 0.0
        %804 = vmatpush.xpose.msra.mxu0 0.0
        %805 = vmatpush.xpose.msra.mxu0 0.0
        %806 = vmatpush.xpose.msra.mxu0 0.0
        %807 = vmatpush.xpose.msra.mxu0 0.0
        %808 = vmatpush.xpose.msra.mxu0 0.0
        %809 = vmatpush.xpose.msra.mxu0 0.0
        %810 = vmatpush.xpose.msra.mxu0 0.0
        %811 = vmatpush.xpose.msra.mxu0 0.0
        %812 = vmatpush.xpose.msra.mxu0 %v795
        %813 = vmatmul.f32.gmra.mxu0 %v792
        %v814 = vpop.f32.mrf.mxu0
        %v815 = vadd.f32 0.0, %v814
        %816 = vdwg.mxu0
        %817 = vxpose.xlu0.b32.start [1/16] %v737, 128
        %818 = vxpose.xlu0.b32.cont [2/16] 0.0, 128
        %819 = vxpose.xlu0.b32.cont [3/16] 0.0, 128
        %820 = vxpose.xlu0.b32.cont [4/16] 0.0, 128
        %821 = vxpose.xlu0.b32.cont [5/16] 0.0, 128
        %822 = vxpose.xlu0.b32.cont [6/16] 0.0, 128
        %823 = vxpose.xlu0.b32.cont [7/16] 0.0, 128
        %824 = vxpose.xlu0.b32.cont [8/16] 0.0, 128
        %825 = vxpose.xlu0.b32.cont [9/16] 0.0, 128
        %826 = vxpose.xlu0.b32.cont [10/16] 0.0, 128
        %827 = vxpose.xlu0.b32.cont [11/16] 0.0, 128
        %828 = vxpose.xlu0.b32.cont [12/16] 0.0, 128
        %829 = vxpose.xlu0.b32.cont [13/16] 0.0, 128
        %830 = vxpose.xlu0.b32.cont [14/16] 0.0, 128
        %831 = vxpose.xlu0.b32.cont [15/16] 0.0, 128
        %832 = vxpose.xlu0.b32.end [16/16] 0.0, 128
        %v833 = vpop.trf.xlu0
        %v834 = vpop.trf.xlu0
        %v835 = vpop.trf.xlu0
        %v836 = vpop.trf.xlu0
        %v837 = vpop.trf.xlu0
        %v838 = vpop.trf.xlu0
        %v839 = vpop.trf.xlu0
        %v840 = vpop.trf.xlu0
        %v841 = vpop.trf.xlu0
        %v842 = vpop.trf.xlu0
        %v843 = vpop.trf.xlu0
        %v844 = vpop.trf.xlu0
        %v845 = vpop.trf.xlu0
        %v846 = vpop.trf.xlu0
        %v847 = vpop.trf.xlu0
        %v848 = vpop.trf.xlu0
        %849 = vxpose.xlu0.b32.start [1/16] %v763, 128
        %850 = vxpose.xlu0.b32.cont [2/16] 0.0, 128
        %851 = vxpose.xlu0.b32.cont [3/16] 0.0, 128
        %852 = vxpose.xlu0.b32.cont [4/16] 0.0, 128
        %853 = vxpose.xlu0.b32.cont [5/16] 0.0, 128
        %854 = vxpose.xlu0.b32.cont [6/16] 0.0, 128
        %855 = vxpose.xlu0.b32.cont [7/16] 0.0, 128
        %856 = vxpose.xlu0.b32.cont [8/16] 0.0, 128
        %857 = vxpose.xlu0.b32.cont [9/16] 0.0, 128
        %858 = vxpose.xlu0.b32.cont [10/16] 0.0, 128
        %859 = vxpose.xlu0.b32.cont [11/16] 0.0, 128
        %860 = vxpose.xlu0.b32.cont [12/16] 0.0, 128
        %861 = vxpose.xlu0.b32.cont [13/16] 0.0, 128
        %862 = vxpose.xlu0.b32.cont [14/16] 0.0, 128
        %863 = vxpose.xlu0.b32.cont [15/16] 0.0, 128
        %864 = vxpose.xlu0.b32.end [16/16] 0.0, 128
        %v865 = vpop.trf.xlu0
        %v866 = vpop.trf.xlu0
        %v867 = vpop.trf.xlu0
        %v868 = vpop.trf.xlu0
        %v869 = vpop.trf.xlu0
        %v870 = vpop.trf.xlu0
        %v871 = vpop.trf.xlu0
        %v872 = vpop.trf.xlu0
        %v873 = vpop.trf.xlu0
        %v874 = vpop.trf.xlu0
        %v875 = vpop.trf.xlu0
        %v876 = vpop.trf.xlu0
        %v877 = vpop.trf.xlu0
        %v878 = vpop.trf.xlu0
        %v879 = vpop.trf.xlu0
        %v880 = vpop.trf.xlu0
        %881 = vxpose.xlu0.b32.start [1/16] %v789, 128
        %882 = vxpose.xlu0.b32.cont [2/16] 0.0, 128
        %883 = vxpose.xlu0.b32.cont [3/16] 0.0, 128
        %884 = vxpose.xlu0.b32.cont [4/16] 0.0, 128
        %885 = vxpose.xlu0.b32.cont [5/16] 0.0, 128
        %886 = vxpose.xlu0.b32.cont [6/16] 0.0, 128
        %887 = vxpose.xlu0.b32.cont [7/16] 0.0, 128
        %888 = vxpose.xlu0.b32.cont [8/16] 0.0, 128
        %889 = vxpose.xlu0.b32.cont [9/16] 0.0, 128
        %890 = vxpose.xlu0.b32.cont [10/16] 0.0, 128
        %891 = vxpose.xlu0.b32.cont [11/16] 0.0, 128
        %892 = vxpose.xlu0.b32.cont [12/16] 0.0, 128
        %893 = vxpose.xlu0.b32.cont [13/16] 0.0, 128
        %894 = vxpose.xlu0.b32.cont [14/16] 0.0, 128
        %895 = vxpose.xlu0.b32.cont [15/16] 0.0, 128
        %896 = vxpose.xlu0.b32.end [16/16] 0.0, 128
        %v897 = vpop.trf.xlu0
        %v898 = vpop.trf.xlu0
        %v899 = vpop.trf.xlu0
        %v900 = vpop.trf.xlu0
        %v901 = vpop.trf.xlu0
        %v902 = vpop.trf.xlu0
        %v903 = vpop.trf.xlu0
        %v904 = vpop.trf.xlu0
        %v905 = vpop.trf.xlu0
        %v906 = vpop.trf.xlu0
        %v907 = vpop.trf.xlu0
        %v908 = vpop.trf.xlu0
        %v909 = vpop.trf.xlu0
        %v910 = vpop.trf.xlu0
        %v911 = vpop.trf.xlu0
        %v912 = vpop.trf.xlu0
        %913 = vxpose.xlu0.b32.start [1/16] %v815, 128
        %914 = vxpose.xlu0.b32.cont [2/16] 0.0, 128
        %915 = vxpose.xlu0.b32.cont [3/16] 0.0, 128
        %916 = vxpose.xlu0.b32.cont [4/16] 0.0, 128
        %917 = vxpose.xlu0.b32.cont [5/16] 0.0, 128
        %918 = vxpose.xlu0.b32.cont [6/16] 0.0, 128
        %919 = vxpose.xlu0.b32.cont [7/16] 0.0, 128
        %920 = vxpose.xlu0.b32.cont [8/16] 0.0, 128
        %921 = vxpose.xlu0.b32.cont [9/16] 0.0, 128
        %922 = vxpose.xlu0.b32.cont [10/16] 0.0, 128
        %923 = vxpose.xlu0.b32.cont [11/16] 0.0, 128
        %924 = vxpose.xlu0.b32.cont [12/16] 0.0, 128
        %925 = vxpose.xlu0.b32.cont [13/16] 0.0, 128
        %926 = vxpose.xlu0.b32.cont [14/16] 0.0, 128
        %927 = vxpose.xlu0.b32.cont [15/16] 0.0, 128
        %928 = vxpose.xlu0.b32.end [16/16] 0.0, 128
        %v929 = vpop.trf.xlu0
        %v930 = vpop.trf.xlu0
        %v931 = vpop.trf.xlu0
        %v932 = vpop.trf.xlu0
        %v933 = vpop.trf.xlu0
        %v934 = vpop.trf.xlu0
        %v935 = vpop.trf.xlu0
        %v936 = vpop.trf.xlu0
        %v937 = vpop.trf.xlu0
        %v938 = vpop.trf.xlu0
        %v939 = vpop.trf.xlu0
        %v940 = vpop.trf.xlu0
        %v941 = vpop.trf.xlu0
        %v942 = vpop.trf.xlu0
        %v943 = vpop.trf.xlu0
        %v944 = vpop.trf.xlu0
        %v945 = vrot.slane %v897, 4
        %vm946 = vcmask 1047556
        %v947 = vsel %vm946, %v945, %v833
        %v948 = vrot.slane %v833, 4
        %v949 = vsel %vm946, %v897, %v948
        %v951 = vunpack.c.l.s4 1983009808
        %v952 = vunpack.c.0.s8 %v951
        %v953 = vperm.slane %v947, %v952
        %v955 = vunpack.c.l.s4 1983009808
        %v956 = vunpack.c.0.s8 %v955
        %v957 = vperm.slane %v949, %v956
        %v958 = vrot.slane %v929, 4
        %v959 = vsel %vm946, %v958, %v865
        %v960 = vrot.slane %v865, 4
        %v961 = vsel %vm946, %v929, %v960
        %v963 = vunpack.c.l.s4 1983009808
        %v964 = vunpack.c.0.s8 %v963
        %v965 = vperm.slane %v959, %v964
        %v967 = vunpack.c.l.s4 1983009808
        %v968 = vunpack.c.0.s8 %v967
        %v969 = vperm.slane %v961, %v968
        %v970 = vrot.slane %v965, 4
        %v971 = vsel %vm946, %v970, %v953
        %v972 = vrot.slane %v953, 4
        %v973 = vsel %vm946, %v965, %v972
        %v975 = vunpack.c.l.s4 1934713408
        %v976 = vunpack.c.0.s8 %v975
        %v977 = vperm.slane %v971, %v976
        %v979 = vunpack.c.l.s4 1934713408
        %v980 = vunpack.c.0.s8 %v979
        %v981 = vperm.slane %v973, %v980
        %v982 = vrot.slane %v969, 4
        %v983 = vsel %vm946, %v982, %v957
        %v984 = vrot.slane %v957, 4
        %v985 = vsel %vm946, %v969, %v984
        %v987 = vunpack.c.l.s4 1934713408
        %v988 = vunpack.c.0.s8 %v987
        %v989 = vperm.slane %v983, %v988
        %v991 = vunpack.c.l.s4 1934713408
        %v992 = vunpack.c.0.s8 %v991
        %v993 = vperm.slane %v985, %v992
        %v994 = vrot.slane %v977, 4
        %v995 = vsel %vm946, 0.0, %v994
        %v996 = vrot.slane %v981, 4
        %v997 = vsel %vm946, 0.0, %v996
        %v998 = vrot.slane %v989, 4
        %v999 = vsel %vm946, 0.0, %v998
        %v1000 = vrot.slane %v993, 4
        %v1001 = vsel %vm946, 0.0, %v1000
        %v1002 = vsel %vm946, %v996, %v977
        %v1004 = vunpack.c.l.s4 1983009808
        %v1005 = vunpack.c.0.s8 %v1004
        %v1006 = vperm.slane %v1002, %v1005
        %v1007 = vrot.slane %v997, 4
        %v1008 = vsel %vm946, %v1007, %v995
        %v1010 = vunpack.c.l.s4 1983009808
        %v1011 = vunpack.c.0.s8 %v1010
        %v1012 = vperm.slane %v1008, %v1011
        %v1013 = vsel %vm946, %v1000, %v989
        %v1015 = vunpack.c.l.s4 1983009808
        %v1016 = vunpack.c.0.s8 %v1015
        %v1017 = vperm.slane %v1013, %v1016
        %v1018 = vrot.slane %v1001, 4
        %v1019 = vsel %vm946, %v1018, %v999
        %v1021 = vunpack.c.l.s4 1983009808
        %v1022 = vunpack.c.0.s8 %v1021
        %v1023 = vperm.slane %v1019, %v1022
        %v1024 = vrot.slane %v1012, 4
        %v1025 = vsel %vm946, %v1024, %v1006
        %v1026 = vrot.slane %v1006, 4
        %v1027 = vsel %vm946, %v1012, %v1026
        %v1029 = vunpack.c.l.s4 1934713408
        %v1030 = vunpack.c.0.s8 %v1029
        %v1031 = vperm.slane %v1025, %v1030
        %v1033 = vunpack.c.l.s4 1934713408
        %v1034 = vunpack.c.0.s8 %v1033
        %v1035 = vperm.slane %v1027, %v1034
        %v1036 = vrot.slane %v1023, 4
        %v1037 = vsel %vm946, %v1036, %v1017
        %v1038 = vrot.slane %v1017, 4
        %v1039 = vsel %vm946, %v1023, %v1038
        %v1041 = vunpack.c.l.s4 1934713408
        %v1042 = vunpack.c.0.s8 %v1041
        %v1043 = vperm.slane %v1037, %v1042
        %v1045 = vunpack.c.l.s4 1934713408
        %v1046 = vunpack.c.0.s8 %v1045
        %v1047 = vperm.slane %v1039, %v1046
        %v1048 = vrot.slane %v1043, 4
        %v1049 = vsel %vm946, %v1048, %v1031
        %v1050 = vrot.slane %v1031, 4
        %v1051 = vsel %vm946, %v1043, %v1050
        %v1052 = vrot.slane %v1047, 4
        %v1053 = vsel %vm946, %v1052, %v1035
        %v1054 = vrot.slane %v1035, 4
        %v1055 = vsel %vm946, %v1047, %v1054
        %1057 = vrot.lane.b32.xlu0 %v1051, 8
        %v1058 = vpop.permute.xlu0 %1057
        %1061 = vrot.lane.b32.xlu0 %v1053, 16
        %v1062 = vpop.permute.xlu0 %1061
        %1065 = vrot.lane.b32.xlu0 %v1055, 24
        %v1066 = vpop.permute.xlu0 %1065
        %v1068 = vsel %vm382, %v1049, %v1058
        %vm1069 = vcmask 130048
        %v1070 = vsel %vm1069, %v1068, %v1062
        %vm1071 = vcmask 195584
        %v1072 = vsel %vm1071, %v1070, %v1066
        %v1073 = vld [vmem:[%s2] sm:$0xff]
        %v1074 = vld [vmem:[%s2 + $0x8] sm:$0xff]
        %v1075 = vld [vmem:[%s2 + $0x10] sm:$0xff]
        %v1076 = vld [vmem:[%s2 + $0x18] sm:$0xff]
        %v1077 = vld [vmem:[%s3] sm:$0x1]
        %v1079 = vperm.slane %v1077, 0
        %vm1081 = vcmask 261120
        %v1083 = vsel %vm1081, %v1072, 0
        %1085 = vmatpush.msra.mxu0 0.0
        %1086 = vmatpush.msra.mxu0 0.0
        %1087 = vmatpush.msra.mxu0 0.0
        %1088 = vmatpush.msra.mxu0 0.0
        %1089 = vmatpush.msra.mxu0 0.0
        %1090 = vmatpush.msra.mxu0 0.0
        %1091 = vmatpush.msra.mxu0 0.0
        %1092 = vmatpush.msra.mxu0 0.0
        %1093 = vmatpush.msra.mxu0 0.0
        %1094 = vmatpush.msra.mxu0 0.0
        %1095 = vmatpush.msra.mxu0 0.0
        %1096 = vmatpush.msra.mxu0 0.0
        %1097 = vmatpush.msra.mxu0 %v1076
        %1098 = vmatpush.msra.mxu0 %v1075
        %1099 = vmatpush.msra.mxu0 %v1074
        %1100 = vmatpush.msra.mxu0 %v1073
        %1101 = vmatmul.f32.gmra.mxu0 %v1083
        %v1102 = vpop.f32.mrf.mxu0
        %v1103 = vadd.f32 %v1079, %v1102
        %1104 = vdwg.mxu0
        %1105 = vst [vmem:[%s188] sm:$0xff] %v1103
        %s1106 = sand.u32 %s115, 1
        %s1107 = scalar_lea.sflag [#allocation3], %s1106
        %s1108 = sand.u32 %s115, 1
        %s1109 = smul.addr %s1108, 8
        %s1110 = scalar_lea.vmem [#allocation2], %s1109
        // Predicated region
        $region37: #{tpu_custom_call.1} parent=35 // pred_check
          %p1111 = pneg %p125
        $region38: #{tpu_custom_call.1} parent=35 // pred_check_branch
          %1113 = sbr.rel (%p1111) target = $region40
        $region39: #{tpu_custom_call.1} parent=35 // pred_region
          %1115 = vsyncadd %s1107, 0
          %s1116 = smul.addr %s18, 8
          %s1117 = scalar_lea.hbm %s4, %s1116
          %s1119 = sshll.u32 %s1110, 4
          %s1120 = int_to_ptr.vmem [resolvable:$true] %s1119
          %s1121 = sshll.u32 %s1117, 4
          %s1122 = int_to_ptr.hbm [resolvable:$true] %s1121
          %1124 = dma.vmem_to_hbm [thread:$0]  %s1120, 128, %s1122, %s1107
        $region40: #{tpu_custom_call.1} parent=35 // pred_fallthru
          _
      $region36: #{tpu_custom_call.1} parent=5 // pred_fallthru
        _
      %p1125 = scmp.le.s32.totalorder 2, %s13
      // Predicated region
      $region41: #{tpu_custom_call.1} parent=5 // pred_check
        %p1126 = pneg %p1125
      $region42: #{tpu_custom_call.1} parent=5 // pred_check_branch
        %1128 = sbr.rel (%p1126) target = $region44
      $region43: #{tpu_custom_call.1} parent=5 // pred_region
        %s1129 = ssub.s32 %s13, 2
        // Predicated region
        $region45: #{tpu_custom_call.1} parent=43 // pred_check
          %p1130 = pneg %p131
        $region46: #{tpu_custom_call.1} parent=43 // pred_check_branch
          %1132 = sbr.rel (%p1130) target = $region48
        $region47: #{tpu_custom_call.1} parent=43 // pred_region
          %s1133 = sand.u32 %s116, 1
          %s1134 = scalar_lea.sflag [#allocation3], %s1133
          %s1135 = sand.u32 %s116, 1
          %s1136 = smul.addr %s1135, 8
          %s1137 = scalar_lea.vmem [#allocation2], %s1136
          %1139 = dma.done %s1134, 128
        $region48: #{tpu_custom_call.1} parent=43 // pred_fallthru
          _
      $region44: #{tpu_custom_call.1} parent=5 // pred_fallthru
        _
    $region6: #{tpu_custom_call.1} parent=1 // loop_footer
      %s17 = sadd.s32 1, %s13
    $region7: #{tpu_custom_call.1} parent=1 // loop_footer_branch
      %12 = sbr.rel target = $region3
    $region8: #{tpu_custom_call.1} parent=1 // loop_exit
      _
    %1140 = vsyncpa [#allocation3], 1
    %s1141 = scalar_lea.sflag [#allocation3], 1
    %1142 = vsyncpa %s1141, 1

</llo_original>
